<compile_context>
chip_gen: v5e
topology: v5e:2x2
jax: 0.10.0
libtpu: 0.0.40
codegen_flags: <defaults>
</compile_context>

<pallas_src>
import math
import functools

import jax
import jax.numpy as jnp
from jax import lax
from jax.experimental import pallas as pl
from jax.experimental.pallas import tpu as pltpu


def _adaptive_sim_kernel(x_ref, h_ref, w1t_ref, b1_ref, w2t_ref, b2_ref,
                         nadj_ref, adj_ref, sim_ref, h2_ref, *,
                         alpha, scale, tq, n_valid, compute_dtype):
    """One (batch, row-stripe) step: emits rows [q*tq, (q+1)*tq) of the
    (N, N) similarity / adjacency / row-normalized adjacency."""
    q = pl.program_id(1)
    n_pad = h2_ref.shape[0]

    # ---- per-batch h2 cache: fc1/fc2 run ONCE per batch (stripe q == 0);
    # every later stripe reuses the cached (N, Cout) activations from VMEM.
    @pl.when(q == 0)
    def _():
        nf = x_ref[0] + h_ref[0]                                  # (N, Cin)
        # fc1 (Conv1d k=1) + ReLU  -> (N, G); MXU matmul, f32 accumulation
        h1 = jnp.dot(nf, w1t_ref[...], preferred_element_type=jnp.float32)
        h1 = jnp.maximum(h1 + b1_ref[...], 0.0)
        # dropout: identity (eval mode)
        # fc2 (Conv1d k=1)         -> (N, Cout)
        h2 = jnp.dot(h1.astype(compute_dtype), w2t_ref[...],
                     preferred_element_type=jnp.float32)
        h2_ref[...] = (h2 + b2_ref[...]).astype(h2_ref.dtype)

    rhs = h2_ref[...]                                             # (N, Cout)

    # ---- this step's query-row stripe (slice the scratch *ref* -> free) ----
    if tq == n_pad:
        h2_rows = rhs
    else:
        start = pl.multiple_of(q * tq, tq)
        h2_rows = h2_ref[pl.ds(start, tq), :]                     # (TQ, Cout)

    # Fold the 1/sqrt(hidden_dim) scale into the small row stripe, then do the
    # big matmul with the contraction on the LAST dim of both operands
    # (no explicit transpose -> no XLU vxpose / extra VMEM temp).
    lhs = (h2_rows.astype(jnp.float32) * scale).astype(compute_dtype)
    sim = lax.dot_general(lhs, rhs,
                          dimension_numbers=(((1,), (1,)), ((), ())),
                          preferred_element_type=jnp.float32)     # (TQ, N)

    # TODO(synk): on v6e/v7x a bf16 tanh would halve EUP pressure when the
    # outputs are bf16; kept f32 here for cross-generation numerical safety.
    adj = jnp.maximum(jnp.tanh(alpha * sim), 0.0)
    if n_valid != n_pad:
        # Zero padded columns so they don't pollute the row-normalization.
        col = lax.broadcasted_iota(jnp.int32, adj.shape, 1)
        adj = jnp.where(col < n_valid, adj, 0.0)

    # NOTE: like the PyTorch module, an all-zero adjacency row divides by zero
    # (diagonal of sim is >= 0, so this only happens for exactly-zero h2 rows).
    row_sum = jnp.sum(adj, axis=-1, keepdims=True)
    nadj = adj * pl.reciprocal(row_sum, approx=True)              # EUP, ~free

    sim_ref[0] = sim.astype(sim_ref.dtype)
    adj_ref[0] = adj.astype(adj_ref.dtype)
    nadj_ref[0] = nadj.astype(nadj_ref.dtype)


def _vmem_capacity_bytes():
    """Per-chip VMEM capacity; conservative (v7x-sized) fallback."""
    try:
        return int(pltpu.get_tpu_info().vmem_capacity_bytes)
    except Exception:
        return 64 << 20


def _choose_tq(n_pad, out_itemsize, out_budget_bytes):
    """Row-stripe height: keep 3 double-buffered (TQ, N) output stripes under
    out_budget_bytes.  n_pad is either <= 512 (single stripe) or a multiple of
    128, so a valid multiple-of-128 divisor (>= 128) always exists."""
    if n_pad <= 512:
        return n_pad
    cap = max(128, out_budget_bytes // (6 * n_pad * out_itemsize))
    best = 128
    d = 128
    while d <= min(cap, n_pad):
        if n_pad % d == 0:
            best = d
        d += 128
    return best


def adaptive_similarity_fc(x, hidden, w1, b1, w2, b2, *, alpha=1.0,
                           compute_dtype=jnp.bfloat16,
                           out_dtype=jnp.bfloat16, tq=None):
    """x, hidden: (B, N, Cin). w1: (G, Cin), b1: (G,), w2: (Cout, G), b2: (Cout,).
    Returns (norm_adj, adj, similarity), each (B, N, N) in out_dtype."""
    B, N, Cin = x.shape
    G = w1.shape[0]
    Cout = w2.shape[0]

    # Pad N to a multiple of 128 for large graphs so every output stripe stays
    # lane-dense and VMEM-bounded regardless of N's factorization.
    N_pad = N if N <= 512 else ((N + 127) // 128) * 128

    # Per-generation VMEM budgets: use most of the 128 MiB on v5e/v6e, leave
    # headroom below v7x's 64 MiB physical VMEM per TensorCore.
    vmem_cap = _vmem_capacity_bytes()
    if vmem_cap >= (96 << 20):            # v5e / v6e (128 MiB)
        vmem_limit_cap = 110 << 20
        out_budget = 64 << 20
    else:                                 # v7x (64 MiB per TC)
        vmem_limit_cap = 52 << 20
        out_budget = 22 << 20

    io = jnp.dtype(out_dtype).itemsize
    ic = jnp.dtype(compute_dtype).itemsize
    if tq is None:
        tq = _choose_tq(N_pad, io, out_budget)
    assert N_pad % tq == 0, (N_pad, tq)

    # Pre-transpose weights (glue) so the kernel does plain (N,Cin)@(Cin,G).
    # Weights/activations in compute_dtype (bf16 -> MXU-native, half the DMA
    # bytes); biases stay f32 since they are added after f32 accumulation.
    w1t = jnp.asarray(w1, jnp.float32).T.astype(compute_dtype)   # (Cin, G)
    w2t = jnp.asarray(w2, jnp.float32).T.astype(compute_dtype)   # (G, Cout)
    b1r = jnp.asarray(b1, jnp.float32).reshape(1, G)
    b2r = jnp.asarray(b2, jnp.float32).reshape(1, Cout)
    xc = jnp.asarray(x, compute_dtype)
    hc = jnp.asarray(hidden, compute_dtype)
    if N_pad != N:
        pad = ((0, 0), (0, N_pad - N), (0, 0))
        xc = jnp.pad(xc, pad)
        hc = jnp.pad(hc, pad)

    kernel = functools.partial(
        _adaptive_sim_kernel,
        alpha=float(alpha),
        scale=float(1.0 / math.sqrt(Cin)),  # matches PyTorch: 1/sqrt(hidden_dim)
        tq=tq, n_valid=N, compute_dtype=compute_dtype)

    out_shape = tuple(jax.ShapeDtypeStruct((B, N_pad, N_pad), out_dtype)
                      for _ in range(3))

    grid_spec = pltpu.PrefetchScalarGridSpec(
        num_scalar_prefetch=0,
        grid=(B, N_pad // tq),
        in_specs=[
            pl.BlockSpec((1, N_pad, Cin), lambda b, q: (b, 0, 0)),  # x (resident)
            pl.BlockSpec((1, N_pad, Cin), lambda b, q: (b, 0, 0)),  # hidden
            pl.BlockSpec((Cin, G), lambda b, q: (0, 0)),            # W1^T
            pl.BlockSpec((1, G), lambda b, q: (0, 0)),              # b1
            pl.BlockSpec((G, Cout), lambda b, q: (0, 0)),           # W2^T
            pl.BlockSpec((1, Cout), lambda b, q: (0, 0)),           # b2
        ],
        out_specs=[
            pl.BlockSpec((1, tq, N_pad), lambda b, q: (b, q, 0)),   # norm_adj
            pl.BlockSpec((1, tq, N_pad), lambda b, q: (b, q, 0)),   # adj
            pl.BlockSpec((1, tq, N_pad), lambda b, q: (b, q, 0)),   # sim
        ],
        scratch_shapes=[pltpu.VMEM((N_pad, Cout), compute_dtype)],  # h2 cache
    )

    # VMEM estimate: double-buffered output stripes + resident inputs/weights
    # + h2 cache + f32 intermediates, with headroom; capped per generation.
    est = (3 * 2 * tq * N_pad * io                 # output stripes (x2 buffers)
           + 2 * 2 * N_pad * Cin * ic              # x, hidden (x2 buffers)
           + 2 * (Cin * G + G * Cout) * ic         # weights
           + 2 * (G + Cout) * 4                    # biases
           + N_pad * Cout * ic                     # h2 cache scratch
           + 3 * N_pad * max(Cin, G, Cout) * 4     # q==0 fc intermediates
           + 4 * tq * N_pad * 4)                   # sim/adj/nadj temporaries
    vmem_limit = int(min(vmem_limit_cap, max(int(1.5 * est), 32 << 20)))

    # q stays "arbitrary": the per-batch h2 cache is filled at q == 0 and must
    # be visited serially per batch.  B is the megacore-parallel axis.
    # TODO(synk): on v7x with B == 1 split q into (parallel, arbitrary) so
    # both TensorCores get work.
    nadj, adj, sim = pl.pallas_call(
        kernel,
        out_shape=out_shape,
        grid_spec=grid_spec,
        compiler_params=pltpu.CompilerParams(
            dimension_semantics=("parallel", "arbitrary"),
            vmem_limit_bytes=vmem_limit),
    )(xc, hc, w1t, b1r, w2t, b2r)

    if N_pad != N:
        nadj = nadj[:, :N, :N]
        adj = adj[:, :N, :N]
        sim = sim[:, :N, :N]
    return nadj, adj, sim


def _reference(x, hidden, w1, b1, w2, b2, alpha=1.0):
    """Pure-JAX reference mirroring the PyTorch forward (eval mode)."""
    B, N, Cin = x.shape
    nf = x + hidden                                    # (B, N, Cin)
    h1 = jax.nn.relu(jnp.einsum("bnc,gc->bng", nf, w1) + b1)
    h2 = jnp.einsum("bng,og->bno", h1, w2) + b2
    sim = jnp.einsum("bnd,bmd->bnm", h2, h2) / math.sqrt(Cin)
    adj = jax.nn.relu(jnp.tanh(alpha * sim))
    nadj = adj / jnp.sum(adj, axis=-1, keepdims=True)
    return nadj, adj, sim


if __name__ == "__main__":
    # Small shapes consistent with the module's forward:
    #   x, hidden : (batch, node_num, hidden_dim=in_channels)
    B, N = 2, 8
    in_channels = 32                 # hidden_dim of the input features
    adaptive_graph_hidden = 16       # config['adaptive_graph_hidden']
    hidden_channels = 32
    alpha = 1.0

    key = jax.random.PRNGKey(0)
    kx, kh, kw1, kb1, kw2, kb2 = jax.random.split(key, 6)

    x = jax.random.normal(kx, (B, N, in_channels), dtype=jnp.float32)
    hidden = jax.random.normal(kh, (B, N, in_channels), dtype=jnp.float32)

    # Deterministic parameter init (PyTorch Conv1d-style uniform bounds).
    bound1 = 1.0 / math.sqrt(in_channels)
    w1 = jax.random.uniform(kw1, (adaptive_graph_hidden, in_channels),
                            minval=-bound1, maxval=bound1, dtype=jnp.float32)
    b1 = jax.random.uniform(kb1, (adaptive_graph_hidden,),
                            minval=-bound1, maxval=bound1, dtype=jnp.float32)
    bound2 = 1.0 / math.sqrt(adaptive_graph_hidden)
    w2 = jax.random.uniform(kw2, (hidden_channels, adaptive_graph_hidden),
                            minval=-bound2, maxval=bound2, dtype=jnp.float32)
    b2 = jax.random.uniform(kb2, (hidden_channels,),
                            minval=-bound2, maxval=bound2, dtype=jnp.float32)

    r_nadj, r_adj, r_sim = _reference(x, hidden, w1, b1, w2, b2, alpha)

    # Accuracy check: f32 compute + f32 outputs (tight tolerance; nadj slightly
    # looser because of the approximate EUP reciprocal in the normalization).
    nadj32, adj32, sim32 = adaptive_similarity_fc(
        x, hidden, w1, b1, w2, b2, alpha=alpha,
        compute_dtype=jnp.float32, out_dtype=jnp.float32)
    jax.block_until_ready((nadj32, adj32, sim32))
    assert jnp.allclose(sim32, r_sim, atol=1e-4, rtol=1e-4)
    assert jnp.allclose(adj32, r_adj, atol=1e-4, rtol=1e-4)
    assert jnp.allclose(nadj32, r_nadj, atol=5e-3, rtol=5e-3)

    # Fast path (default): bf16 MXU operands + bf16 outputs, looser tolerance.
    norm_adj, adj, sim = adaptive_similarity_fc(x, hidden, w1, b1, w2, b2,
                                                alpha=alpha)
    jax.block_until_ready((norm_adj, adj, sim))
    assert jnp.allclose(sim.astype(jnp.float32), r_sim, atol=5e-2, rtol=5e-2)
    assert jnp.allclose(adj.astype(jnp.float32), r_adj, atol=5e-2, rtol=5e-2)
    assert jnp.allclose(norm_adj.astype(jnp.float32), r_nadj,
                        atol=5e-2, rtol=5e-2)

    print("KERNEL_OK")
</pallas_src>

<mosaic_0001>
module attributes {stable_mosaic.version = 11 : i64} {
  func.func @_adaptive_sim_kernel(%arg0: i32, %arg1: i32, %arg2: memref<1x8x32xf32, #tpu.memory_space<vmem>>, %arg3: memref<1x8x32xf32, #tpu.memory_space<vmem>>, %arg4: memref<32x16xf32, #tpu.memory_space<vmem>>, %arg5: memref<1x16xf32, #tpu.memory_space<vmem>>, %arg6: memref<16x32xf32, #tpu.memory_space<vmem>>, %arg7: memref<1x32xf32, #tpu.memory_space<vmem>>, %arg8: memref<1x8x8xf32, #tpu.memory_space<vmem>>, %arg9: memref<1x8x8xf32, #tpu.memory_space<vmem>>, %arg10: memref<1x8x8xf32, #tpu.memory_space<vmem>>, %arg11: memref<8x32xf32, #tpu.memory_space<vmem>>) attributes {dimension_semantics = [#tpu.dimension_semantics<parallel>, #tpu.dimension_semantics<arbitrary>], iteration_bounds = array<i64: 2, 1>, scalar_prefetch = 0 : i64, scratch_operands = 1 : i64, tpu.core_type = #tpu.core_type<tc>, window_params = [{transform_indices = @transform_0, window_bounds = array<i64: 1, 8, 32>}, {transform_indices = @transform_1, window_bounds = array<i64: 1, 8, 32>}, {pipeline_mode = #tpu.pipeline_mode<synchronous>, transform_indices = @transform_2, window_bounds = array<i64: 32, 16>}, {pipeline_mode = #tpu.pipeline_mode<synchronous>, transform_indices = @transform_3, window_bounds = array<i64: 1, 16>}, {pipeline_mode = #tpu.pipeline_mode<synchronous>, transform_indices = @transform_4, window_bounds = array<i64: 16, 32>}, {pipeline_mode = #tpu.pipeline_mode<synchronous>, transform_indices = @transform_5, window_bounds = array<i64: 1, 32>}, {transform_indices = @transform_6, window_bounds = array<i64: 1, 8, 8>}, {transform_indices = @transform_7, window_bounds = array<i64: 1, 8, 8>}, {transform_indices = @transform_8, window_bounds = array<i64: 1, 8, 8>}]} {
    %c0_i32 = arith.constant 0 : i32
    %0 = arith.cmpi eq, %arg1, %c0_i32 : i32
    %1 = arith.extui %0 : i1 to i32
    %c0_i32_0 = arith.constant 0 : i32
    %2 = arith.cmpi ne, %1, %c0_i32_0 : i32
    scf.if %2 {
      %c0_15 = arith.constant 0 : index
      %c0_16 = arith.constant 0 : index
      %c0_17 = arith.constant 0 : index
      %26 = vector.load %arg2[%c0_15, %c0_16, %c0_17] : memref<1x8x32xf32, #tpu.memory_space<vmem>>, vector<1x8x32xf32>
      %27 = vector.shape_cast %26 : vector<1x8x32xf32> to vector<8x32xf32>
      %c0_18 = arith.constant 0 : index
      %c0_19 = arith.constant 0 : index
      %c0_20 = arith.constant 0 : index
      %28 = vector.load %arg3[%c0_18, %c0_19, %c0_20] : memref<1x8x32xf32, #tpu.memory_space<vmem>>, vector<1x8x32xf32>
      %29 = vector.shape_cast %28 : vector<1x8x32xf32> to vector<8x32xf32>
      %30 = arith.addf %27, %29 : vector<8x32xf32>
      %c0_21 = arith.constant 0 : index
      %c0_22 = arith.constant 0 : index
      %31 = vector.load %arg4[%c0_21, %c0_22] : memref<32x16xf32, #tpu.memory_space<vmem>>, vector<32x16xf32>
      %cst_23 = arith.constant dense<0.000000e+00> : vector<8x16xf32>
      %32 = tpu.matmul %30, %31, %cst_23 {dimension_numbers = #tpu.dot_dimension_numbers<[1], [0], [0], [1], [0, 0, 1, 1], [], []>} : vector<8x32xf32>, vector<32x16xf32>, vector<8x16xf32> -> vector<8x16xf32>
      %c0_24 = arith.constant 0 : index
      %c0_25 = arith.constant 0 : index
      %33 = vector.load %arg5[%c0_24, %c0_25] : memref<1x16xf32, #tpu.memory_space<vmem>>, vector<1x16xf32>
      %34 = vector.broadcast %33 : vector<1x16xf32> to vector<8x16xf32>
      %35 = arith.addf %32, %34 : vector<8x16xf32>
      %cst_26 = arith.constant 0.000000e+00 : f32
      %36 = vector.broadcast %cst_26 : f32 to vector<8x16xf32>
      %37 = arith.maximumf %35, %36 : vector<8x16xf32>
      %c0_27 = arith.constant 0 : index
      %c0_28 = arith.constant 0 : index
      %38 = vector.load %arg6[%c0_27, %c0_28] : memref<16x32xf32, #tpu.memory_space<vmem>>, vector<16x32xf32>
      %cst_29 = arith.constant dense<0.000000e+00> : vector<8x32xf32>
      %39 = tpu.matmul %37, %38, %cst_29 {dimension_numbers = #tpu.dot_dimension_numbers<[1], [0], [0], [1], [0, 0, 1, 1], [], []>} : vector<8x16xf32>, vector<16x32xf32>, vector<8x32xf32> -> vector<8x32xf32>
      %c0_30 = arith.constant 0 : index
      %c0_31 = arith.constant 0 : index
      %40 = vector.load %arg7[%c0_30, %c0_31] : memref<1x32xf32, #tpu.memory_space<vmem>>, vector<1x32xf32>
      %41 = vector.broadcast %40 : vector<1x32xf32> to vector<8x32xf32>
      %42 = arith.addf %39, %41 : vector<8x32xf32>
      %c0_32 = arith.constant 0 : index
      %c0_33 = arith.constant 0 : index
      %43 = vector.load %arg11[%c0_32, %c0_33] : memref<8x32xf32, #tpu.memory_space<vmem>>, vector<8x32xf32>
      tpu.vector_store %arg11[%c0_32, %c0_33], %42 {strides = array<i32>} : memref<8x32xf32, #tpu.memory_space<vmem>>, vector<8x32xf32>,
    } else {
    }
    %c0 = arith.constant 0 : index
    %c0_1 = arith.constant 0 : index
    %3 = vector.load %arg11[%c0, %c0_1] : memref<8x32xf32, #tpu.memory_space<vmem>>, vector<8x32xf32>
    %cst = arith.constant 0.176776692 : f32
    %4 = vector.broadcast %cst : f32 to vector<8x32xf32>
    %5 = arith.mulf %3, %4 : vector<8x32xf32>
    %cst_2 = arith.constant dense<0.000000e+00> : vector<8x8xf32>
    %6 = tpu.matmul %5, %3, %cst_2 {dimension_numbers = #tpu.dot_dimension_numbers<[1], [1], [0], [0], [0, 0, 1, 0], [], []>} : vector<8x32xf32>, vector<8x32xf32>, vector<8x8xf32> -> vector<8x8xf32>
    %cst_3 = arith.constant 1.000000e+00 : f32
    %7 = vector.broadcast %cst_3 : f32 to vector<8x8xf32>
    %8 = arith.mulf %7, %6 : vector<8x8xf32>
    %9 = math.tanh %8 : vector<8x8xf32>
    %cst_4 = arith.constant 0.000000e+00 : f32
    %10 = vector.broadcast %cst_4 : f32 to vector<8x8xf32>
    %11 = arith.maximumf %9, %10 : vector<8x8xf32>
    %cst_5 = arith.constant dense<0.000000e+00> : vector<8xf32>
    %12 = vector.multi_reduction <add>, %11, %cst_5 [1] : vector<8x8xf32> to vector<8xf32>
    %13 = vector.shape_cast %12 : vector<8xf32> to vector<8x1xf32>
    %14 = tpu.reciprocal %13 {approx = true} : vector<8x1xf32> -> vector<8x1xf32>
    %15 = vector.broadcast %14 : vector<8x1xf32> to vector<8x8xf32>
    %16 = arith.mulf %11, %15 : vector<8x8xf32>
    %c0_6 = arith.constant 0 : index
    %c0_7 = arith.constant 0 : index
    %c0_8 = arith.constant 0 : index
    %17 = vector.load %arg10[%c0_6, %c0_7, %c0_8] : memref<1x8x8xf32, #tpu.memory_space<vmem>>, vector<1x8x8xf32>
    %18 = vector.shape_cast %17 : vector<1x8x8xf32> to vector<8x8xf32>
    %19 = vector.shape_cast %6 : vector<8x8xf32> to vector<1x8x8xf32>
    tpu.vector_store %arg10[%c0_6, %c0_7, %c0_8], %19 {strides = array<i32>} : memref<1x8x8xf32, #tpu.memory_space<vmem>>, vector<1x8x8xf32>,
    %c0_9 = arith.constant 0 : index
    %c0_10 = arith.constant 0 : index
    %c0_11 = arith.constant 0 : index
    %20 = vector.load %arg9[%c0_9, %c0_10, %c0_11] : memref<1x8x8xf32, #tpu.memory_space<vmem>>, vector<1x8x8xf32>
    %21 = vector.shape_cast %20 : vector<1x8x8xf32> to vector<8x8xf32>
    %22 = vector.shape_cast %11 : vector<8x8xf32> to vector<1x8x8xf32>
    tpu.vector_store %arg9[%c0_9, %c0_10, %c0_11], %22 {strides = array<i32>} : memref<1x8x8xf32, #tpu.memory_space<vmem>>, vector<1x8x8xf32>,
    %c0_12 = arith.constant 0 : index
    %c0_13 = arith.constant 0 : index
    %c0_14 = arith.constant 0 : index
    %23 = vector.load %arg8[%c0_12, %c0_13, %c0_14] : memref<1x8x8xf32, #tpu.memory_space<vmem>>, vector<1x8x8xf32>
    %24 = vector.shape_cast %23 : vector<1x8x8xf32> to vector<8x8xf32>
    %25 = vector.shape_cast %16 : vector<8x8xf32> to vector<1x8x8xf32>
    tpu.vector_store %arg8[%c0_12, %c0_13, %c0_14], %25 {strides = array<i32>} : memref<1x8x8xf32, #tpu.memory_space<vmem>>, vector<1x8x8xf32>,
    return
  }
  func.func @transform_0(%arg0: i32, %arg1: i32) -> (i32, i32, i32) {
    %c0_i32 = arith.constant 0 : i32
    %c0_i32_0 = arith.constant 0 : i32
    %c0_i32_1 = arith.constant 0 : i32
    return %arg0, %c0_i32, %c0_i32_0 : i32, i32, i32
  }
  func.func @transform_1(%arg0: i32, %arg1: i32) -> (i32, i32, i32) {
    %c0_i32 = arith.constant 0 : i32
    %c0_i32_0 = arith.constant 0 : i32
    %c0_i32_1 = arith.constant 0 : i32
    return %arg0, %c0_i32, %c0_i32_0 : i32, i32, i32
  }
  func.func @transform_2(%arg0: i32, %arg1: i32) -> (i32, i32) {
    %c0_i32 = arith.constant 0 : i32
    %c0_i32_0 = arith.constant 0 : i32
    %c0_i32_1 = arith.constant 0 : i32
    return %c0_i32, %c0_i32_0 : i32, i32
  }
  func.func @transform_3(%arg0: i32, %arg1: i32) -> (i32, i32) {
    %c0_i32 = arith.constant 0 : i32
    %c0_i32_0 = arith.constant 0 : i32
    %c0_i32_1 = arith.constant 0 : i32
    return %c0_i32, %c0_i32_0 : i32, i32
  }
  func.func @transform_4(%arg0: i32, %arg1: i32) -> (i32, i32) {
    %c0_i32 = arith.constant 0 : i32
    %c0_i32_0 = arith.constant 0 : i32
    %c0_i32_1 = arith.constant 0 : i32
    return %c0_i32, %c0_i32_0 : i32, i32
  }
  func.func @transform_5(%arg0: i32, %arg1: i32) -> (i32, i32) {
    %c0_i32 = arith.constant 0 : i32
    %c0_i32_0 = arith.constant 0 : i32
    %c0_i32_1 = arith.constant 0 : i32
    return %c0_i32, %c0_i32_0 : i32, i32
  }
  func.func @transform_6(%arg0: i32, %arg1: i32) -> (i32, i32, i32) {
    %c0_i32 = arith.constant 0 : i32
    %c0_i32_0 = arith.constant 0 : i32
    return %arg0, %arg1, %c0_i32 : i32, i32, i32
  }
  func.func @transform_7(%arg0: i32, %arg1: i32) -> (i32, i32, i32) {
    %c0_i32 = arith.constant 0 : i32
    %c0_i32_0 = arith.constant 0 : i32
    return %arg0, %arg1, %c0_i32 : i32, i32, i32
  }
  func.func @transform_8(%arg0: i32, %arg1: i32) -> (i32, i32, i32) {
    %c0_i32 = arith.constant 0 : i32
    %c0_i32_0 = arith.constant 0 : i32
    return %arg0, %arg1, %c0_i32 : i32, i32, i32
  }
}

</mosaic_0001>

<llo_original>
// kernel: tpu_custom_call.1
$region0: #{tpu_custom_call.1}
  #allocation0 [shape = 'u32[]', space=smem, size = 0x4, offset = 0x4, fixed_abs, tag = 'smem constant byte address 0x4 - core index']
  #allocation1 [shape = 'u32[72,128]{1,0:T(1,128)}', space=vmem, size = 0x9000, scoped, tag = 'internal scratch']
  #allocation2 [shape = 'f32[8,32]{1,0:T(8,128)}', space=vmem, size = 0x1000, scoped, tag = 'scratch operand']
  %s0 = inlined_call_operand.vmem [shape: f32[2,8,32], index: 0, kind: input, shape index: {}]
  %s1 = inlined_call_operand.vmem [shape: f32[2,8,32], index: 1, kind: input, shape index: {}]
  %s2 = inlined_call_operand.vmem [shape: f32[32,16], index: 2, kind: input, shape index: {}]
  %s3 = inlined_call_operand.vmem [shape: f32[1,16], index: 3, kind: input, shape index: {}]
  %s4 = inlined_call_operand.vmem [shape: f32[16,32], index: 4, kind: input, shape index: {}]
  %s5 = inlined_call_operand.vmem [shape: f32[1,32], index: 5, kind: input, shape index: {}]
  %s6 = inlined_call_operand.hbm [shape: f32[2,8,8], index: 6, kind: output, shape index: {0}]
  %s7 = inlined_call_operand.hbm [shape: f32[2,8,8], index: 7, kind: output, shape index: {1}]
  %s8 = inlined_call_operand.hbm [shape: f32[2,8,8], index: 8, kind: output, shape index: {2}]
  %9 = xla_tuple %s6, %s7, %s8
  %s10 = sld [smem:[#allocation0]]
  $region77: #{tpu_custom_call.1} parent=0
    _
  %s12 = ssub.s32 1, %s10
  %s13 = scalar_select 0, %s12, %s10
  $region1: #{tpu_custom_call.1} parent=0
    #allocation3 [shape = 'u8[8192]{0}', space=vmem, size = 0x2000, scoped, tag = 'output window, operand 0']
    #allocation4 [shape = 's32[2]{0}', space=sflag, size = 0x8, scoped, tag = 'scoped memory for tpu_custom_call.1']
    #allocation5 [shape = 'u8[8192]{0}', space=vmem, size = 0x2000, scoped, tag = 'output window, operand 1']
    #allocation6 [shape = 's32[2]{0}', space=sflag, size = 0x8, scoped, tag = 'scoped memory for tpu_custom_call.1']
    #allocation7 [shape = 'u8[8192]{0}', space=vmem, size = 0x2000, scoped, tag = 'output window, operand 2']
    %14 = vsyncpa [#allocation4], 0
    %s15 = scalar_lea.sflag [#allocation4], 1
    %16 = vsyncpa %s15, 0
    %17 = vsyncpa [#allocation6], 0
    %s18 = scalar_lea.sflag [#allocation6], 1
    %19 = vsyncpa %s18, 0
    loop: start=0, step=1, limit=4
    $region2: #{tpu_custom_call.1} parent=1 // loop_pre_header
      _
    $region3: #{tpu_custom_call.1} parent=1 // loop_header
      %s21 = sphi 0, %s25
      %p22 = scmp.ge.s32.totalorder %s21, 4
      %s28 = sphi 0, %s40
      %s29 = sphi 0, %s36
      %s30 = sphi 0, %s28
      %s31 = sphi 0, %s29
      %s32 = sphi 0, %s30
      %s33 = sphi 0, %s31
      %s43 = sphi 0, %s45
      %s46 = sphi 0, %s43
      %s47 = sphi 0, %s46
      %s63 = sphi 0, %s47
      %s69 = sphi 0, %s71
      %s72 = sphi 0, %s69
      %s73 = sphi 0, %s72
      %s89 = sphi 0, %s73
      %s93 = sphi 0, %s93
      %s95 = sphi 0, %s93
      %s96 = sphi 0, %s95
      %s110 = sphi 0, %s96
      %s114 = sphi 0, %s114
      %s116 = sphi 0, %s114
      %s117 = sphi 0, %s116
      %s131 = sphi 0, %s117
      %s135 = sphi 0, %s135
      %s137 = sphi 0, %s135
      %s138 = sphi 0, %s137
      %s152 = sphi 0, %s138
      %s156 = sphi 0, %s156
      %s158 = sphi 0, %s156
      %s159 = sphi 0, %s158
      %s173 = sphi 0, %s159
      %s181 = sphi 0, %s183
      %s184 = sphi 0, %s181
      %s185 = sphi 0, %s184
      %s201 = sphi 0, %s185
      %s209 = sphi 0, %s211
      %s212 = sphi 0, %s209
      %s213 = sphi 0, %s212
      %s229 = sphi 0, %s213
      %s237 = sphi 0, %s239
      %s240 = sphi 0, %s237
      %s241 = sphi 0, %s240
      %s257 = sphi 0, %s241
    $region4: #{tpu_custom_call.1} parent=1 // loop_header_branch
      %24 = sbr.rel (%p22) target = $region8
    $region5: #{tpu_custom_call.1} parent=1 // loop_body
      %s26 = ssub.s32 %s21, 1
      %s27 = ssub.s32 %s21, 2
      %s34 = sadd.s32 1, %s29
      %p35 = scmp.ge.s32.totalorder %s34, 1
      %s36 = scalar_select %p35, 0, %s34
      %s37 = sadd.s32 1, %s28
      %s38 = scalar_select %p35, %s37, %s28
      %p39 = scmp.ge.s32.totalorder %s38, 2
      %s40 = scalar_select %p39, 0, %s38
      %s41 = ssub.s32 %s28, %s40
      %p42 = scmp.eq.s32.totalorder %s41, 0
      %s44 = sadd.s32 %s43, 1
      %s45 = scalar_select %p42, %s43, %s44
      %p48 = pneg %p42
      %p49 = scmp.eq.s32.totalorder %s21, 1
      %p50 = por %p48, %p49
      %p51 = scmp.ne.s32.totalorder %s43, %s46
      %p52 = scmp.eq.s32.totalorder %s21, 0
      %p53 = por %p51, %p52
      %p54 = scmp.ne.s32.totalorder %s43, %s46
      %p55 = scmp.eq.s32.totalorder %s26, 1
      %p56 = por %p54, %p55
      %p57 = scmp.ne.s32.totalorder %s46, %s47
      %p58 = scmp.eq.s32.totalorder %s26, 0
      %p59 = por %p57, %p58
      %p60 = scmp.ne.s32.totalorder %s46, %s47
      %p61 = scmp.eq.s32.totalorder %s27, 1
      %p62 = por %p60, %p61
      %p64 = scmp.ne.s32.totalorder %s47, %s63
      %p65 = scmp.eq.s32.totalorder %s27, 0
      %p66 = por %p64, %p65
      %s67 = ssub.s32 %s28, %s40
      %p68 = scmp.eq.s32.totalorder %s67, 0
      %s70 = sadd.s32 %s69, 1
      %s71 = scalar_select %p68, %s69, %s70
      %p74 = pneg %p68
      %p75 = scmp.eq.s32.totalorder %s21, 1
      %p76 = por %p74, %p75
      %p77 = scmp.ne.s32.totalorder %s69, %s72
      %p78 = scmp.eq.s32.totalorder %s21, 0
      %p79 = por %p77, %p78
      %p80 = scmp.ne.s32.totalorder %s69, %s72
      %p81 = scmp.eq.s32.totalorder %s26, 1
      %p82 = por %p80, %p81
      %p83 = scmp.ne.s32.totalorder %s72, %s73
      %p84 = scmp.eq.s32.totalorder %s26, 0
      %p85 = por %p83, %p84
      %p86 = scmp.ne.s32.totalorder %s72, %s73
      %p87 = scmp.eq.s32.totalorder %s27, 1
      %p88 = por %p86, %p87
      %p90 = scmp.ne.s32.totalorder %s73, %s89
      %p91 = scmp.eq.s32.totalorder %s27, 0
      %p92 = por %p90, %p91
      %s94 = sadd.s32 %s93, 1
      %p97 = scmp.eq.s32.totalorder %s21, 1
      %p98 = scmp.ne.s32.totalorder %s93, %s95
      %p99 = scmp.eq.s32.totalorder %s21, 0
      %p100 = por %p98, %p99
      %p101 = scmp.ne.s32.totalorder %s93, %s95
      %p102 = scmp.eq.s32.totalorder %s26, 1
      %p103 = por %p101, %p102
      %p104 = scmp.ne.s32.totalorder %s95, %s96
      %p105 = scmp.eq.s32.totalorder %s26, 0
      %p106 = por %p104, %p105
      %p107 = scmp.ne.s32.totalorder %s95, %s96
      %p108 = scmp.eq.s32.totalorder %s27, 1
      %p109 = por %p107, %p108
      %p111 = scmp.ne.s32.totalorder %s96, %s110
      %p112 = scmp.eq.s32.totalorder %s27, 0
      %p113 = por %p111, %p112
      %s115 = sadd.s32 %s114, 1
      %p118 = scmp.eq.s32.totalorder %s21, 1
      %p119 = scmp.ne.s32.totalorder %s114, %s116
      %p120 = scmp.eq.s32.totalorder %s21, 0
      %p121 = por %p119, %p120
      %p122 = scmp.ne.s32.totalorder %s114, %s116
      %p123 = scmp.eq.s32.totalorder %s26, 1
      %p124 = por %p122, %p123
      %p125 = scmp.ne.s32.totalorder %s116, %s117
      %p126 = scmp.eq.s32.totalorder %s26, 0
      %p127 = por %p125, %p126
      %p128 = scmp.ne.s32.totalorder %s116, %s117
      %p129 = scmp.eq.s32.totalorder %s27, 1
      %p130 = por %p128, %p129
      %p132 = scmp.ne.s32.totalorder %s117, %s131
      %p133 = scmp.eq.s32.totalorder %s27, 0
      %p134 = por %p132, %p133
      %s136 = sadd.s32 %s135, 1
      %p139 = scmp.eq.s32.totalorder %s21, 1
      %p140 = scmp.ne.s32.totalorder %s135, %s137
      %p141 = scmp.eq.s32.totalorder %s21, 0
      %p142 = por %p140, %p141
      %p143 = scmp.ne.s32.totalorder %s135, %s137
      %p144 = scmp.eq.s32.totalorder %s26, 1
      %p145 = por %p143, %p144
      %p146 = scmp.ne.s32.totalorder %s137, %s138
      %p147 = scmp.eq.s32.totalorder %s26, 0
      %p148 = por %p146, %p147
      %p149 = scmp.ne.s32.totalorder %s137, %s138
      %p150 = scmp.eq.s32.totalorder %s27, 1
      %p151 = por %p149, %p150
      %p153 = scmp.ne.s32.totalorder %s138, %s152
      %p154 = scmp.eq.s32.totalorder %s27, 0
      %p155 = por %p153, %p154
      %s157 = sadd.s32 %s156, 1
      %p160 = scmp.eq.s32.totalorder %s21, 1
      %p161 = scmp.ne.s32.totalorder %s156, %s158
      %p162 = scmp.eq.s32.totalorder %s21, 0
      %p163 = por %p161, %p162
      %p164 = scmp.ne.s32.totalorder %s156, %s158
      %p165 = scmp.eq.s32.totalorder %s26, 1
      %p166 = por %p164, %p165
      %p167 = scmp.ne.s32.totalorder %s158, %s159
      %p168 = scmp.eq.s32.totalorder %s26, 0
      %p169 = por %p167, %p168
      %p170 = scmp.ne.s32.totalorder %s158, %s159
      %p171 = scmp.eq.s32.totalorder %s27, 1
      %p172 = por %p170, %p171
      %p174 = scmp.ne.s32.totalorder %s159, %s173
      %p175 = scmp.eq.s32.totalorder %s27, 0
      %p176 = por %p174, %p175
      %s177 = ssub.s32 %s28, %s40
      %s178 = ssub.s32 %s29, %s36
      %s179 = sor.u32 %s177, %s178
      %p180 = scmp.eq.s32.totalorder %s179, 0
      %s182 = sadd.s32 %s181, 1
      %s183 = scalar_select %p180, %s181, %s182
      %p186 = pneg %p180
      %p187 = scmp.eq.s32.totalorder %s21, 1
      %p188 = por %p186, %p187
      %p189 = scmp.ne.s32.totalorder %s181, %s184
      %p190 = scmp.eq.s32.totalorder %s21, 0
      %p191 = por %p189, %p190
      %p192 = scmp.ne.s32.totalorder %s181, %s184
      %p193 = scmp.eq.s32.totalorder %s26, 1
      %p194 = por %p192, %p193
      %p195 = scmp.ne.s32.totalorder %s184, %s185
      %p196 = scmp.eq.s32.totalorder %s26, 0
      %p197 = por %p195, %p196
      %p198 = scmp.ne.s32.totalorder %s184, %s185
      %p199 = scmp.eq.s32.totalorder %s27, 1
      %p200 = por %p198, %p199
      %p202 = scmp.ne.s32.totalorder %s185, %s201
      %p203 = scmp.eq.s32.totalorder %s27, 0
      %p204 = por %p202, %p203
      %s205 = ssub.s32 %s28, %s40
      %s206 = ssub.s32 %s29, %s36
      %s207 = sor.u32 %s205, %s206
      %p208 = scmp.eq.s32.totalorder %s207, 0
      %s210 = sadd.s32 %s209, 1
      %s211 = scalar_select %p208, %s209, %s210
      %p214 = pneg %p208
      %p215 = scmp.eq.s32.totalorder %s21, 1
      %p216 = por %p214, %p215
      %p217 = scmp.ne.s32.totalorder %s209, %s212
      %p218 = scmp.eq.s32.totalorder %s21, 0
      %p219 = por %p217, %p218
      %p220 = scmp.ne.s32.totalorder %s209, %s212
      %p221 = scmp.eq.s32.totalorder %s26, 1
      %p222 = por %p220, %p221
      %p223 = scmp.ne.s32.totalorder %s212, %s213
      %p224 = scmp.eq.s32.totalorder %s26, 0
      %p225 = por %p223, %p224
      %p226 = scmp.ne.s32.totalorder %s212, %s213
      %p227 = scmp.eq.s32.totalorder %s27, 1
      %p228 = por %p226, %p227
      %p230 = scmp.ne.s32.totalorder %s213, %s229
      %p231 = scmp.eq.s32.totalorder %s27, 0
      %p232 = por %p230, %p231
      %s233 = ssub.s32 %s28, %s40
      %s234 = ssub.s32 %s29, %s36
      %s235 = sor.u32 %s233, %s234
      %p236 = scmp.eq.s32.totalorder %s235, 0
      %s238 = sadd.s32 %s237, 1
      %s239 = scalar_select %p236, %s237, %s238
      %p242 = pneg %p236
      %p243 = scmp.eq.s32.totalorder %s21, 1
      %p244 = por %p242, %p243
      %p245 = scmp.ne.s32.totalorder %s237, %s240
      %p246 = scmp.eq.s32.totalorder %s21, 0
      %p247 = por %p245, %p246
      %p248 = scmp.ne.s32.totalorder %s237, %s240
      %p249 = scmp.eq.s32.totalorder %s26, 1
      %p250 = por %p248, %p249
      %p251 = scmp.ne.s32.totalorder %s240, %s241
      %p252 = scmp.eq.s32.totalorder %s26, 0
      %p253 = por %p251, %p252
      %p254 = scmp.ne.s32.totalorder %s240, %s241
      %p255 = scmp.eq.s32.totalorder %s27, 1
      %p256 = por %p254, %p255
      %p258 = scmp.ne.s32.totalorder %s241, %s257
      %p259 = scmp.eq.s32.totalorder %s27, 0
      %p260 = por %p258, %p259
      %p261 = scmp.le.s32.totalorder 1, %s21
      %p262 = scmp.lt.s32.totalorder %s21, 3
      %p263 = pnand %p261, %p262
      %p264 = pneg %p263
      // Predicated region
      $region9: #{tpu_custom_call.1} parent=5 // pred_check
        _
      $region10: #{tpu_custom_call.1} parent=5 // pred_check_branch
        %266 = sbr.rel (%p263) target = $region12
      $region11: #{tpu_custom_call.1} parent=5 // pred_region
        %s267 = ssub.s32 %s21, 1
        // Predicated region
        $region13: #{tpu_custom_call.1} parent=11 // pred_check
          %p268 = pneg %p106
        $region14: #{tpu_custom_call.1} parent=11 // pred_check_branch
          %270 = sbr.rel (%p268) target = $region16
        $region15: #{tpu_custom_call.1} parent=11 // pred_region
          _
        $region16: #{tpu_custom_call.1} parent=11 // pred_fallthru
          _
        // Predicated region
        $region17: #{tpu_custom_call.1} parent=11 // pred_check
          %p271 = pneg %p127
        $region18: #{tpu_custom_call.1} parent=11 // pred_check_branch
          %273 = sbr.rel (%p271) target = $region20
        $region19: #{tpu_custom_call.1} parent=11 // pred_region
          _
        $region20: #{tpu_custom_call.1} parent=11 // pred_fallthru
          _
        // Predicated region
        $region21: #{tpu_custom_call.1} parent=11 // pred_check
          %p274 = pneg %p148
        $region22: #{tpu_custom_call.1} parent=11 // pred_check_branch
          %276 = sbr.rel (%p274) target = $region24
        $region23: #{tpu_custom_call.1} parent=11 // pred_region
          _
        $region24: #{tpu_custom_call.1} parent=11 // pred_fallthru
          _
        // Predicated region
        $region25: #{tpu_custom_call.1} parent=11 // pred_check
          %p277 = pneg %p169
        $region26: #{tpu_custom_call.1} parent=11 // pred_check_branch
          %279 = sbr.rel (%p277) target = $region28
        $region27: #{tpu_custom_call.1} parent=11 // pred_region
          _
        $region28: #{tpu_custom_call.1} parent=11 // pred_fallthru
          _
      $region12: #{tpu_custom_call.1} parent=5 // pred_fallthru
        _
      %p280 = scmp.lt.s32.totalorder %s21, 2
      // Predicated region
      $region29: #{tpu_custom_call.1} parent=5 // pred_check
        %p281 = pneg %p280
      $region30: #{tpu_custom_call.1} parent=5 // pred_check_branch
        %283 = sbr.rel (%p281) target = $region32
      $region31: #{tpu_custom_call.1} parent=5 // pred_region
        // Predicated region
        $region33: #{tpu_custom_call.1} parent=31 // pred_check
          %p284 = pneg %p53
        $region34: #{tpu_custom_call.1} parent=31 // pred_check_branch
          %286 = sbr.rel (%p284) target = $region36
        $region35: #{tpu_custom_call.1} parent=31 // pred_region
          %p287 = scmp.lt.s32.totalorder %s28, 1
          %s288 = scalar_select %p287, %s28, 1
          %s289 = smul.addr %s288, 8
          %s290 = scalar_lea.vmem %s0, %s289
        $region36: #{tpu_custom_call.1} parent=31 // pred_fallthru
          _
        // Predicated region
        $region37: #{tpu_custom_call.1} parent=31 // pred_check
          %p291 = pneg %p79
        $region38: #{tpu_custom_call.1} parent=31 // pred_check_branch
          %293 = sbr.rel (%p291) target = $region40
        $region39: #{tpu_custom_call.1} parent=31 // pred_region
          %p294 = scmp.lt.s32.totalorder %s28, 1
          %s295 = scalar_select %p294, %s28, 1
          %s296 = smul.addr %s295, 8
          %s297 = scalar_lea.vmem %s1, %s296
        $region40: #{tpu_custom_call.1} parent=31 // pred_fallthru
          _
      $region32: #{tpu_custom_call.1} parent=5 // pred_fallthru
        _
      %p298 = scmp.le.s32.totalorder 1, %s21
      %p299 = scmp.lt.s32.totalorder %s21, 3
      %p300 = pnand %p298, %p299
      %p301 = pneg %p300
      // Predicated region
      $region41: #{tpu_custom_call.1} parent=5 // pred_check
        _
      $region42: #{tpu_custom_call.1} parent=5 // pred_check_branch
        %303 = sbr.rel (%p300) target = $region44
      $region43: #{tpu_custom_call.1} parent=5 // pred_region
        %s304 = ssub.s32 %s21, 1
        %p305 = scmp.lt.s32.totalorder %s30, 1
        %s306 = scalar_select %p305, %s30, 1
        %s307 = smul.addr %s306, 8
        %s308 = scalar_lea.vmem %s0, %s307
        %p309 = pneg %p59
        %p310 = pneg %p56
        %p311 = scmp.lt.s32.totalorder %s30, 1
        %s312 = scalar_select %p311, %s30, 1
        %s313 = smul.addr %s312, 8
        %s314 = scalar_lea.vmem %s1, %s313
        %p315 = pneg %p85
        %p316 = pneg %p82
        %p317 = pneg %p106
        %p318 = pneg %p103
        %p319 = pneg %p127
        %p320 = pneg %p124
        %p321 = pneg %p148
        %p322 = pneg %p145
        %p323 = pneg %p169
        %p324 = pneg %p166
        %p325 = pneg %p197
        %p326 = pneg %p194
        %s327 = sand.u32 %s184, 1
        %s328 = scalar_lea.sflag [#allocation4], %s327
        %s329 = sand.u32 %s184, 1
        %s330 = smul.addr %s329, 8
        %s331 = scalar_lea.vmem [#allocation3], %s330
        %p332 = pneg %p225
        %p333 = pneg %p222
        %s334 = sand.u32 %s26, 1
        %s335 = scalar_lea.sflag [#allocation6], %s334
        %s336 = sand.u32 %s212, 1
        %s337 = smul.addr %s336, 8
        %s338 = scalar_lea.vmem [#allocation5], %s337
        %p339 = pneg %p253
        %p340 = pneg %p250
        %s341 = sand.u32 %s26, 1
        %s342 = scalar_lea.sflag [#allocation6], %s341
        %s343 = sand.u32 %s240, 1
        %s344 = smul.addr %s343, 8
        %s345 = scalar_lea.vmem [#allocation7], %s344
        %p346 = scmp.lt.s32.totalorder %s30, 1
        %s347 = scalar_select %p346, %s30, 1
        %s348 = smul.addr %s347, 8
        %s349 = scalar_lea.vmem %s0, %s348
        %p350 = scmp.lt.s32.totalorder %s30, 1
        %s351 = scalar_select %p350, %s30, 1
        %s352 = smul.addr %s351, 8
        %s353 = scalar_lea.vmem %s1, %s352
        %p354 = scmp.eq.s32.totalorder %s31, 0
        // Predicated region
        $region45: #{tpu_custom_call.1} parent=43 // pred_check
          %p355 = pneg %p354
        $region46: #{tpu_custom_call.1} parent=43 // pred_check_branch
          %357 = sbr.rel (%p355) target = $region48
        $region47: #{tpu_custom_call.1} parent=43 // pred_region
          %v358 = vld [vmem:[%s349] sm:$0xff]
          %v359 = vld [vmem:[%s353] sm:$0xff]
          %v360 = vadd.f32 %v358, %v359
          %v361 = vld [vmem:[%s2] sm:$0xff]
          %v362 = vld [vmem:[%s2 + $0x8] sm:$0xff]
          %v363 = vld [vmem:[%s2 + $0x10] sm:$0xff]
          %v364 = vld [vmem:[%s2 + $0x18] sm:$0xff]
          %v365 = vld [vmem:[%s3] sm:$0x1]
          %v367 = vperm.slane %v365, 0
          %vm369 = vcmask 261120
          %v371 = vsel %vm369, %v360, 0
          %373 = vmatpush.msra.mxu0 0.0
          %374 = vmatpush.msra.mxu0 0.0
          %375 = vmatpush.msra.mxu0 0.0
          %376 = vmatpush.msra.mxu0 0.0
          %377 = vmatpush.msra.mxu0 0.0
          %378 = vmatpush.msra.mxu0 0.0
          %379 = vmatpush.msra.mxu0 0.0
          %380 = vmatpush.msra.mxu0 0.0
          %381 = vmatpush.msra.mxu0 0.0
          %382 = vmatpush.msra.mxu0 0.0
          %383 = vmatpush.msra.mxu0 0.0
          %384 = vmatpush.msra.mxu0 0.0
          %385 = vmatpush.msra.mxu0 %v364
          %386 = vmatpush.msra.mxu0 %v363
          %387 = vmatpush.msra.mxu0 %v362
          %388 = vmatpush.msra.mxu0 %v361
          %389 = vmatmul.f32.gmra.mxu0 %v371
          %v390 = vpop.f32.mrf.mxu0
          %v391 = vadd.f32 %v367, %v390
          %392 = vdwg.mxu0
          %v393 = vmax.f32 %v391, 0.0
          %v394 = vld [vmem:[%s4] sm:$0xff]
          %v395 = vld [vmem:[%s4 + $0x8] sm:$0xff]
          %v396 = vld [vmem:[%s5] sm:$0x1]
          %v398 = vperm.slane %v396, 0
          %vm400 = vcmask 130048
          %v402 = vsel %vm400, %v393, 0
          %404 = vmatpush.msra.mxu0 0.0
          %405 = vmatpush.msra.mxu0 0.0
          %406 = vmatpush.msra.mxu0 0.0
          %407 = vmatpush.msra.mxu0 0.0
          %408 = vmatpush.msra.mxu0 0.0
          %409 = vmatpush.msra.mxu0 0.0
          %410 = vmatpush.msra.mxu0 0.0
          %411 = vmatpush.msra.mxu0 0.0
          %412 = vmatpush.msra.mxu0 0.0
          %413 = vmatpush.msra.mxu0 0.0
          %414 = vmatpush.msra.mxu0 0.0
          %415 = vmatpush.msra.mxu0 0.0
          %416 = vmatpush.msra.mxu0 0.0
          %417 = vmatpush.msra.mxu0 0.0
          %418 = vmatpush.msra.mxu0 %v395
          %419 = vmatpush.msra.mxu0 %v394
          %420 = vmatmul.f32.gmra.mxu0 %v402
          %v421 = vpop.f32.mrf.mxu0
          %v422 = vadd.f32 %v398, %v421
          %423 = vdwg.mxu0
          %424 = vst.msk [vmem:[#allocation2] sm:$0xff] %vm369, %v422
        $region48: #{tpu_custom_call.1} parent=43 // pred_fallthru
          _
        %v425 = vld [vmem:[#allocation2] sm:$0xff]
        %v426 = vmul.f32 %v425, 0.17677669
        %vm427 = vcmask 261120
        %v429 = vsel %vm427, %v426, 0
        %v432 = vsel %vm427, %v425, 0
        %434 = vmatpush.xpose.msra.mxu0 0.0
        %435 = vmatpush.xpose.msra.mxu0 0.0
        %436 = vmatpush.xpose.msra.mxu0 0.0
        %437 = vmatpush.xpose.msra.mxu0 0.0
        %438 = vmatpush.xpose.msra.mxu0 0.0
        %439 = vmatpush.xpose.msra.mxu0 0.0
        %440 = vmatpush.xpose.msra.mxu0 0.0
        %441 = vmatpush.xpose.msra.mxu0 0.0
        %442 = vmatpush.xpose.msra.mxu0 0.0
        %443 = vmatpush.xpose.msra.mxu0 0.0
        %444 = vmatpush.xpose.msra.mxu0 0.0
        %445 = vmatpush.xpose.msra.mxu0 0.0
        %446 = vmatpush.xpose.msra.mxu0 0.0
        %447 = vmatpush.xpose.msra.mxu0 0.0
        %448 = vmatpush.xpose.msra.mxu0 0.0
        %449 = vmatpush.xpose.msra.mxu0 %v432
        %450 = vmatmul.f32.gmra.mxu0 %v429
        %v451 = vpop.f32.mrf.mxu0
        %v452 = vadd.f32 0.0, %v451
        %453 = vdwg.mxu0
        %v454 = vtanh.pop %v452
        %v455 = vmax.f32 %v454, 0.0
        %vm456 = vcmask 64512
        %v457 = vsel %vm456, %v455, 0.0
        %458 = vadd.xlane.f32.xlu0 %v457
        %v459 = vpop.xlane.xlu0 %458
        %v460 = vrcp.pop %v459
        %v461 = vmul.f32 %v455, %v460
        %462 = vst.msk [vmem:[%s345] sm:$0xff] %vm456, %v452
        %463 = vst.msk [vmem:[%s338] sm:$0xff] %vm456, %v455
        %464 = vst.msk [vmem:[%s331] sm:$0xff] %vm456, %v461
        %s465 = sand.u32 %s184, 1
        %s466 = scalar_lea.sflag [#allocation4], %s465
        %s467 = sand.u32 %s184, 1
        %s468 = smul.addr %s467, 8
        %s469 = scalar_lea.vmem [#allocation3], %s468
        %s470 = sand.u32 %s26, 1
        %s471 = scalar_lea.sflag [#allocation6], %s470
        %s472 = sand.u32 %s212, 1
        %s473 = smul.addr %s472, 8
        %s474 = scalar_lea.vmem [#allocation5], %s473
        %s475 = sand.u32 %s26, 1
        %s476 = scalar_lea.sflag [#allocation6], %s475
        %s477 = sand.u32 %s240, 1
        %s478 = smul.addr %s477, 8
        %s479 = scalar_lea.vmem [#allocation7], %s478
        // Predicated region
        $region49: #{tpu_custom_call.1} parent=43 // pred_check
          %p480 = pneg %p194
        $region50: #{tpu_custom_call.1} parent=43 // pred_check_branch
          %482 = sbr.rel (%p480) target = $region52
        $region51: #{tpu_custom_call.1} parent=43 // pred_region
          %484 = vsyncadd %s466, 0
          %s485 = sadd.s32 %s31, %s30
          %s486 = smul.addr %s485, 8
          %s487 = scalar_lea.hbm %s6, %s486
          %s489 = sshll.u32 %s469, 4
          %s490 = int_to_ptr.vmem [resolvable:$true] %s489
          %s491 = sshll.u32 %s487, 4
          %s492 = int_to_ptr.hbm [resolvable:$true] %s491
          %494 = dma.vmem_to_hbm [thread:$0]  %s490, 128, %s492, %s466
        $region52: #{tpu_custom_call.1} parent=43 // pred_fallthru
          _
        // Predicated region
        $region53: #{tpu_custom_call.1} parent=43 // pred_check
          %p495 = pneg %p222
        $region54: #{tpu_custom_call.1} parent=43 // pred_check_branch
          %497 = sbr.rel (%p495) target = $region56
        $region55: #{tpu_custom_call.1} parent=43 // pred_region
          %499 = vsyncadd %s471, 0
          %s500 = sadd.s32 %s31, %s30
          %s501 = smul.addr %s500, 8
          %s502 = scalar_lea.hbm %s7, %s501
          %s504 = sshll.u32 %s474, 4
          %s505 = int_to_ptr.vmem [resolvable:$true] %s504
          %s506 = sshll.u32 %s502, 4
          %s507 = int_to_ptr.hbm [resolvable:$true] %s506
          %509 = dma.vmem_to_hbm [thread:$0]  %s505, 128, %s507, %s471
        $region56: #{tpu_custom_call.1} parent=43 // pred_fallthru
          _
        // Predicated region
        $region57: #{tpu_custom_call.1} parent=43 // pred_check
          %p510 = pneg %p250
        $region58: #{tpu_custom_call.1} parent=43 // pred_check_branch
          %512 = sbr.rel (%p510) target = $region60
        $region59: #{tpu_custom_call.1} parent=43 // pred_region
          %514 = vsyncadd %s476, 0
          %s515 = sadd.s32 %s31, %s30
          %s516 = smul.addr %s515, 8
          %s517 = scalar_lea.hbm %s8, %s516
          %s519 = sshll.u32 %s479, 4
          %s520 = int_to_ptr.vmem [resolvable:$true] %s519
          %s521 = sshll.u32 %s517, 4
          %s522 = int_to_ptr.hbm [resolvable:$true] %s521
          %524 = dma.vmem_to_hbm [thread:$0]  %s520, 128, %s522, %s476
        $region60: #{tpu_custom_call.1} parent=43 // pred_fallthru
          _
      $region44: #{tpu_custom_call.1} parent=5 // pred_fallthru
        _
      %p525 = scmp.le.s32.totalorder 2, %s21
      // Predicated region
      $region61: #{tpu_custom_call.1} parent=5 // pred_check
        %p526 = pneg %p525
      $region62: #{tpu_custom_call.1} parent=5 // pred_check_branch
        %528 = sbr.rel (%p526) target = $region64
      $region63: #{tpu_custom_call.1} parent=5 // pred_region
        %s529 = ssub.s32 %s21, 2
        // Predicated region
        $region65: #{tpu_custom_call.1} parent=63 // pred_check
          %p530 = pneg %p200
        $region66: #{tpu_custom_call.1} parent=63 // pred_check_branch
          %532 = sbr.rel (%p530) target = $region68
        $region67: #{tpu_custom_call.1} parent=63 // pred_region
          %s533 = sand.u32 %s185, 1
          %s534 = scalar_lea.sflag [#allocation4], %s533
          %s535 = sand.u32 %s185, 1
          %s536 = smul.addr %s535, 8
          %s537 = scalar_lea.vmem [#allocation3], %s536
          %539 = dma.done %s534, 128
        $region68: #{tpu_custom_call.1} parent=63 // pred_fallthru
          _
        // Predicated region
        $region69: #{tpu_custom_call.1} parent=63 // pred_check
          %p540 = pneg %p228
        $region70: #{tpu_custom_call.1} parent=63 // pred_check_branch
          %542 = sbr.rel (%p540) target = $region72
        $region71: #{tpu_custom_call.1} parent=63 // pred_region
          %s543 = sand.u32 %s27, 1
          %s544 = scalar_lea.sflag [#allocation6], %s543
          %s545 = sand.u32 %s213, 1
          %s546 = smul.addr %s545, 8
          %s547 = scalar_lea.vmem [#allocation5], %s546
          %549 = dma.done %s544, 128
        $region72: #{tpu_custom_call.1} parent=63 // pred_fallthru
          _
        // Predicated region
        $region73: #{tpu_custom_call.1} parent=63 // pred_check
          %p550 = pneg %p256
        $region74: #{tpu_custom_call.1} parent=63 // pred_check_branch
          %552 = sbr.rel (%p550) target = $region76
        $region75: #{tpu_custom_call.1} parent=63 // pred_region
          %s553 = sand.u32 %s27, 1
          %s554 = scalar_lea.sflag [#allocation6], %s553
          %s555 = sand.u32 %s241, 1
          %s556 = smul.addr %s555, 8
          %s557 = scalar_lea.vmem [#allocation7], %s556
          %559 = dma.done %s554, 128
        $region76: #{tpu_custom_call.1} parent=63 // pred_fallthru
          _
      $region64: #{tpu_custom_call.1} parent=5 // pred_fallthru
        _
    $region6: #{tpu_custom_call.1} parent=1 // loop_footer
      %s25 = sadd.s32 1, %s21
    $region7: #{tpu_custom_call.1} parent=1 // loop_footer_branch
      %20 = sbr.rel target = $region3
    $region8: #{tpu_custom_call.1} parent=1 // loop_exit
      _
    %560 = vsyncpa [#allocation4], 1
    %s561 = scalar_lea.sflag [#allocation4], 1
    %562 = vsyncpa %s561, 1
    %563 = vsyncpa [#allocation6], 1
    %s564 = scalar_lea.sflag [#allocation6], 1
    %565 = vsyncpa %s564, 1

</llo_original>
